<compile_context>
chip_gen: v7x
topology: tpu7x:2x2x1
jax: 0.10.0
libtpu: 0.0.40
codegen_flags: <defaults>
</compile_context>

<pallas_src>
import functools

import jax
import jax.numpy as jnp
from jax import lax
from jax.experimental import pallas as pl
from jax.experimental.pallas import tpu as pltpu


def _round_up(x, m):
    return ((x + m - 1) // m) * m


def _ls_ce_kernel(out_ref, tgt_ref, loss_ref, *, epsilon, n_valid, tiles_per_split):
    s = pl.program_id(0)   # parallel split (megacore on v7x)
    j = pl.program_id(1)   # batch-tile index within split (reduction axis)

    @pl.when(j == 0)
    def _():
        loss_ref[...] = jnp.zeros_like(loss_ref)

    x = out_ref[...].astype(jnp.float32)        # (TN, C) logits tile, f32 compute
    t = tgt_ref[...]                            # (TN, 1) int32 targets tile
    tn, c = x.shape

    # Per-row logsumexp along the class (lane) axis.
    m = jnp.max(x, axis=-1, keepdims=True)
    lse = m + jnp.log(jnp.sum(jnp.exp(x - m), axis=-1, keepdims=True))   # (TN, 1)

    # gather(dim=-1, index=targets) via one-hot select; sum of logits per row.
    cols = lax.broadcasted_iota(jnp.int32, (tn, c), 1)
    picked_x = jnp.sum(jnp.where(cols == t, x, 0.0), axis=-1, keepdims=True)  # (TN, 1)
    sum_x = jnp.sum(x, axis=-1, keepdims=True)                                # (TN, 1)

    # Reconstruct log-prob quantities without materializing logp = x - lse.
    picked_logp = picked_x - lse                 # (TN, 1)
    sum_logp = sum_x - c * lse                   # (TN, 1)

    per_row = (-picked_logp * (1.0 - epsilon)
               - (epsilon / c) * sum_logp)       # (TN, 1)

    # Mask rows that are batch padding so they contribute 0 to the sum.
    row0 = (s * tiles_per_split + j) * tn
    rows = row0 + lax.broadcasted_iota(jnp.int32, (tn, 1), 0)
    per_row = jnp.where(rows < n_valid, per_row, 0.0)

    loss_ref[...] += jnp.sum(per_row)


def label_smoothed_cross_entropy(outputs, targets, epsilon=0.1, block_n=None):
    """outputs: (N, C) float logits (any float dtype); targets: (N,) int class ids.

    Returns the scalar mean label-smoothed cross-entropy (f32).
    """
    n, c = outputs.shape
    itemsize = jnp.dtype(outputs.dtype).itemsize

    if block_n is None:
        # ~4 MiB per logits tile: well under scoped-VMEM limits on v5e/v6e/v7x
        # even after double-buffering and the in-kernel f32 upcast/temps.
        tile_budget = 4 * 1024 * 1024
        block_n = max(8, min(1024, tile_budget // max(1, c * itemsize)))
        block_n = (block_n // 16) * 16 if block_n >= 16 else 8
    # Never tile wider than the (padded) batch.
    block_n = max(8, min(block_n, _round_up(n, 16)))

    n_tiles = pl.cdiv(n, block_n)
    n_split = 2 if n_tiles >= 2 else 1           # feed both TensorCores on v7x
    tiles_per_split = pl.cdiv(n_tiles, n_split)
    n_pad = block_n * tiles_per_split * n_split

    if n_pad != n:
        outputs = jnp.pad(outputs, ((0, n_pad - n), (0, 0)))
        targets = jnp.pad(targets, ((0, n_pad - n),))
    targets2d = targets.reshape(n_pad, 1).astype(jnp.int32)

    kernel = functools.partial(
        _ls_ce_kernel,
        epsilon=float(epsilon),
        n_valid=n,
        tiles_per_split=tiles_per_split,
    )

    loss_parts = pl.pallas_call(
        kernel,
        out_shape=jax.ShapeDtypeStruct((n_split, 1, 1), jnp.float32),
        grid_spec=pltpu.PrefetchScalarGridSpec(
            num_scalar_prefetch=0,
            grid=(n_split, tiles_per_split),
            in_specs=[
                pl.BlockSpec((block_n, c),
                             lambda s, j: (s * tiles_per_split + j, 0)),
                pl.BlockSpec((block_n, 1),
                             lambda s, j: (s * tiles_per_split + j, 0)),
            ],
            out_specs=pl.BlockSpec((1, 1, 1), lambda s, j: (s, 0, 0)),
        ),
        compiler_params=pltpu.CompilerParams(
            dimension_semantics=("parallel", "arbitrary"),
            vmem_limit_bytes=48 * 1024 * 1024,
        ),
    )(outputs, targets2d)    # NOTE: native logits dtype, no wrapper f32 cast

    return jnp.sum(loss_parts) / n


def _reference(outputs, targets, epsilon=0.1):
    n_classes = outputs.shape[-1]
    log_preds = jax.nn.log_softmax(outputs, axis=-1)
    picked = jnp.take_along_axis(log_preds, targets[:, None], axis=-1)[:, 0]
    loss = -picked * (1.0 - epsilon) - epsilon / n_classes * jnp.sum(log_preds, axis=-1)
    return jnp.mean(loss)


if __name__ == "__main__":
    key = jax.random.PRNGKey(0)
    k_out, k_tgt = jax.random.split(key)

    # Small shapes consistent with the module: (batch, classes) logits + int targets.
    N, C = 16, 16
    outputs = jax.random.normal(k_out, (N, C), dtype=jnp.float32)
    targets = jax.random.randint(k_tgt, (N,), 0, C, dtype=jnp.int32)

    loss = jax.block_until_ready(label_smoothed_cross_entropy(outputs, targets, epsilon=0.1))
    ref = _reference(outputs, targets, epsilon=0.1)
    assert jnp.allclose(loss, ref, atol=1e-5, rtol=1e-5), (loss, ref)

    # Ragged batch + bf16 logits: exercises padding/masking and the native-dtype path.
    N2, C2 = 37, 48
    k_out2, k_tgt2 = jax.random.split(k_tgt)
    outputs2 = jax.random.normal(k_out2, (N2, C2), dtype=jnp.float32).astype(jnp.bfloat16)
    targets2 = jax.random.randint(k_tgt2, (N2,), 0, C2, dtype=jnp.int32)
    loss2 = jax.block_until_ready(label_smoothed_cross_entropy(outputs2, targets2, epsilon=0.1))
    ref2 = _reference(outputs2.astype(jnp.float32), targets2, epsilon=0.1)
    assert jnp.allclose(loss2, ref2, atol=1e-4, rtol=1e-4), (loss2, ref2)

    print("KERNEL_OK")
</pallas_src>

<mosaic_0001>
module attributes {stable_mosaic.version = 11 : i64} {
  func.func @_ls_ce_kernel(%arg0: i32, %arg1: i32, %arg2: memref<16x16xf32, #tpu.memory_space<vmem>>, %arg3: memref<16x1xi32, #tpu.memory_space<vmem>>, %arg4: memref<1x1x1xf32, #tpu.memory_space<vmem>>) attributes {dimension_semantics = [#tpu.dimension_semantics<parallel>, #tpu.dimension_semantics<arbitrary>], iteration_bounds = array<i64: 1, 1>, scalar_prefetch = 0 : i64, scratch_operands = 0 : i64, tpu.core_type = #tpu.core_type<tc>, window_params = [{transform_indices = @transform_0, window_bounds = array<i64: 16, 16>}, {transform_indices = @transform_1, window_bounds = array<i64: 16, 1>}, {transform_indices = @transform_2, window_bounds = array<i64: 1, 1, 1>}]} {
    %c0_i32 = arith.constant 0 : i32
    %0 = arith.cmpi eq, %arg1, %c0_i32 : i32
    %1 = arith.extui %0 : i1 to i32
    %c0_i32_0 = arith.constant 0 : i32
    %2 = arith.cmpi ne, %1, %c0_i32_0 : i32
    scf.if %2 {
      %cst_21 = arith.constant 0.000000e+00 : f32
      %52 = vector.broadcast %cst_21 : f32 to vector<1x1x1xf32>
      %c0_22 = arith.constant 0 : index
      %c0_23 = arith.constant 0 : index
      %c0_24 = arith.constant 0 : index
      %53 = vector.load %arg4[%c0_22, %c0_23, %c0_24] : memref<1x1x1xf32, #tpu.memory_space<vmem>>, vector<1x1x1xf32>
      tpu.vector_store %arg4[%c0_22, %c0_23, %c0_24], %52 {strides = array<i32>} : memref<1x1x1xf32, #tpu.memory_space<vmem>>, vector<1x1x1xf32>,
    } else {
    }
    %c0 = arith.constant 0 : index
    %c0_1 = arith.constant 0 : index
    %3 = vector.load %arg2[%c0, %c0_1] : memref<16x16xf32, #tpu.memory_space<vmem>>, vector<16x16xf32>
    %c0_2 = arith.constant 0 : index
    %c0_3 = arith.constant 0 : index
    %4 = vector.load %arg3[%c0_2, %c0_3] : memref<16x1xi32, #tpu.memory_space<vmem>>, vector<16x1xi32>
    %cst = arith.constant dense<0xFF800000> : vector<16xf32>
    %5 = vector.multi_reduction <maximumf>, %3, %cst [1] : vector<16x16xf32> to vector<16xf32>
    %6 = vector.shape_cast %5 : vector<16xf32> to vector<16x1xf32>
    %7 = vector.broadcast %6 : vector<16x1xf32> to vector<16x16xf32>
    %8 = arith.subf %3, %7 : vector<16x16xf32>
    %9 = math.exp %8 : vector<16x16xf32>
    %cst_4 = arith.constant dense<0.000000e+00> : vector<16xf32>
    %10 = vector.multi_reduction <add>, %9, %cst_4 [1] : vector<16x16xf32> to vector<16xf32>
    %11 = vector.shape_cast %10 : vector<16xf32> to vector<16x1xf32>
    %12 = math.log %11 : vector<16x1xf32>
    %13 = arith.addf %6, %12 : vector<16x1xf32>
    %14 = tpu.iota {dimensions = array<i32: 1>} : vector<16x16xi32>
    %15 = vector.broadcast %4 : vector<16x1xi32> to vector<16x16xi32>
    %16 = arith.cmpi eq, %14, %15 : vector<16x16xi32>
    %cst_5 = arith.constant 0.000000e+00 : f32
    %17 = vector.broadcast %cst_5 : f32 to vector<16x16xf32>
    %18 = arith.select %16, %3, %17 : vector<16x16xi1>, vector<16x16xf32>
    %cst_6 = arith.constant dense<0.000000e+00> : vector<16xf32>
    %19 = vector.multi_reduction <add>, %18, %cst_6 [1] : vector<16x16xf32> to vector<16xf32>
    %20 = vector.shape_cast %19 : vector<16xf32> to vector<16x1xf32>
    %cst_7 = arith.constant dense<0.000000e+00> : vector<16xf32>
    %21 = vector.multi_reduction <add>, %3, %cst_7 [1] : vector<16x16xf32> to vector<16xf32>
    %22 = vector.shape_cast %21 : vector<16xf32> to vector<16x1xf32>
    %23 = arith.subf %20, %13 : vector<16x1xf32>
    %cst_8 = arith.constant 1.600000e+01 : f32
    %24 = vector.broadcast %cst_8 : f32 to vector<16x1xf32>
    %25 = arith.mulf %24, %13 : vector<16x1xf32>
    %26 = arith.subf %22, %25 : vector<16x1xf32>
    %cst_9 = arith.constant 0.000000e+00 : f32
    %27 = vector.broadcast %cst_9 : f32 to vector<16x1xf32>
    %28 = arith.subf %27, %23 : vector<16x1xf32>
    %cst_10 = arith.constant 0.899999976 : f32
    %29 = vector.broadcast %cst_10 : f32 to vector<16x1xf32>
    %30 = arith.mulf %28, %29 : vector<16x1xf32>
    %cst_11 = arith.constant 6.250000e-03 : f32
    %31 = vector.broadcast %cst_11 : f32 to vector<16x1xf32>
    %32 = arith.mulf %31, %26 : vector<16x1xf32>
    %33 = arith.subf %30, %32 : vector<16x1xf32>
    %c1_i32 = arith.constant 1 : i32
    %34 = arith.muli %arg0, %c1_i32 : i32
    %35 = arith.addi %34, %arg1 : i32
    %c16_i32 = arith.constant 16 : i32
    %36 = arith.muli %35, %c16_i32 : i32
    %37 = tpu.iota {dimensions = array<i32: 0>} : vector<16x1xi32>
    %38 = vector.broadcast %36 : i32 to vector<16x1xi32>
    %39 = arith.addi %38, %37 : vector<16x1xi32>
    %c16_i32_12 = arith.constant 16 : i32
    %40 = vector.broadcast %c16_i32_12 : i32 to vector<16x1xi32>
    %41 = arith.cmpi slt, %39, %40 : vector<16x1xi32>
    %cst_13 = arith.constant 0.000000e+00 : f32
    %42 = vector.broadcast %cst_13 : f32 to vector<16x1xf32>
    %43 = arith.select %41, %33, %42 : vector<16x1xi1>, vector<16x1xf32>
    %c0_14 = arith.constant 0 : index
    %c0_15 = arith.constant 0 : index
    %c0_16 = arith.constant 0 : index
    %44 = vector.load %arg4[%c0_14, %c0_15, %c0_16] : memref<1x1x1xf32, #tpu.memory_space<vmem>>, vector<1x1x1xf32>
    %45 = vector.shape_cast %43 : vector<16x1xf32> to vector<1x16x1xf32>
    %cst_17 = arith.constant dense<0.000000e+00> : vector<1xf32>
    %46 = vector.multi_reduction <add>, %45, %cst_17 [1, 2] : vector<1x16x1xf32> to vector<1xf32>
    %47 = vector.shape_cast %46 : vector<1xf32> to vector<1x1x1xf32>
    %48 = vector.extract %47[0, 0, 0] : f32 from vector<1x1x1xf32>
    %49 = vector.broadcast %48 : f32 to vector<1x1x1xf32>
    %50 = arith.addf %44, %49 : vector<1x1x1xf32>
    %c0_18 = arith.constant 0 : index
    %c0_19 = arith.constant 0 : index
    %c0_20 = arith.constant 0 : index
    %51 = vector.load %arg4[%c0_18, %c0_19, %c0_20] : memref<1x1x1xf32, #tpu.memory_space<vmem>>, vector<1x1x1xf32>
    tpu.vector_store %arg4[%c0_18, %c0_19, %c0_20], %50 {strides = array<i32>} : memref<1x1x1xf32, #tpu.memory_space<vmem>>, vector<1x1x1xf32>,
    return
  }
  func.func @transform_0(%arg0: i32, %arg1: i32) -> (i32, i32) {
    %c1_i32 = arith.constant 1 : i32
    %0 = arith.muli %arg0, %c1_i32 : i32
    %1 = arith.addi %0, %arg1 : i32
    %c0_i32 = arith.constant 0 : i32
    %c0_i32_0 = arith.constant 0 : i32
    return %1, %c0_i32 : i32, i32
  }
  func.func @transform_1(%arg0: i32, %arg1: i32) -> (i32, i32) {
    %c1_i32 = arith.constant 1 : i32
    %0 = arith.muli %arg0, %c1_i32 : i32
    %1 = arith.addi %0, %arg1 : i32
    %c0_i32 = arith.constant 0 : i32
    %c0_i32_0 = arith.constant 0 : i32
    return %1, %c0_i32 : i32, i32
  }
  func.func @transform_2(%arg0: i32, %arg1: i32) -> (i32, i32, i32) {
    %c0_i32 = arith.constant 0 : i32
    %c0_i32_0 = arith.constant 0 : i32
    %c0_i32_1 = arith.constant 0 : i32
    return %arg0, %c0_i32, %c0_i32_0 : i32, i32, i32
  }
}

</mosaic_0001>

<llo_original>
// kernel: tpu_custom_call.1
$region0: #{tpu_custom_call.1}
  #allocation0 [shape = 'u32[]', space=smem, size = 0x4, offset = 0x4, fixed_abs, tag = 'smem constant byte address 0x4 - core index']
  #allocation1 [shape = 'u32[144,128]{1,0:T(1,128)}', space=vmem, size = 0x12000, scoped, tag = 'internal scratch']
  %s0 = inlined_call_operand.vmem [shape: f32[16,16], index: 0, kind: input, shape index: {}]
  %s1 = inlined_call_operand.vmem [shape: s32[16,1], index: 1, kind: input, shape index: {}]
  %s2 = inlined_call_operand.hbm [shape: f32[1,1,1], index: 2, kind: output, shape index: {}]
  %s3 = sld [smem:[#allocation0]]
  $region22: #{tpu_custom_call.1} parent=0
    _
  %s5 = ssub.s32 1, %s3
  %s6 = scalar_select 0, %s5, %s3
  $region1: #{tpu_custom_call.1} parent=0
    #allocation2 [shape = 'u8[512]{0}', space=vmem, size = 0x400, scoped, tag = 'output window, operand 0, single buffered']
    #allocation3 [shape = 's32[1]{0}', space=sflag, size = 0x4, scoped, tag = 'scoped memory for tpu_custom_call.1']
    %7 = vsyncpa [#allocation3], 0
    // Predicated region
    $region2: #{tpu_custom_call.1} parent=1 // pred_check
      _
    $region3: #{tpu_custom_call.1} parent=1 // pred_check_branch
      %9 = sbr.rel (0) target = $region5
    $region4: #{tpu_custom_call.1} parent=1 // pred_region
      %s10 = sadd.s32 0, 0
      %s11 = smul.u32 2, %s10
      %p12 = scmp.lt.s32.totalorder %s11, 1
      %s13 = scalar_select %p12, %s11, 1
      %s14 = smul.addr %s13, 8
      %s15 = scalar_lea.vmem %s0, %s14
      %s16 = sadd.s32 0, 0
      %s17 = smul.u32 2, %s16
    $region5: #{tpu_custom_call.1} parent=1 // pred_fallthru
      _
    // Predicated region
    $region6: #{tpu_custom_call.1} parent=1 // pred_check
      _
    $region7: #{tpu_custom_call.1} parent=1 // pred_check_branch
      %19 = sbr.rel (0) target = $region9
    $region8: #{tpu_custom_call.1} parent=1 // pred_region
      %s20 = sadd.s32 0, 0
      %s21 = smul.u32 2, %s20
      %p22 = scmp.lt.s32.totalorder %s21, 1
      %s23 = scalar_select %p22, %s21, 1
      %s24 = smul.addr %s23, 8
      %s25 = scalar_lea.vmem %s1, %s24
      %s26 = sadd.s32 0, 0
      %s27 = smul.u32 2, %s26
    $region9: #{tpu_custom_call.1} parent=1 // pred_fallthru
      _
    %s28 = sadd.s32 0, 0
    %s29 = smul.u32 2, %s28
    %p30 = scmp.lt.s32.totalorder %s29, 1
    %s31 = scalar_select %p30, %s29, 1
    %s32 = smul.addr %s31, 8
    %s33 = scalar_lea.vmem %s0, %s32
    %s34 = sadd.s32 0, 0
    %s35 = smul.u32 2, %s34
    %p36 = scmp.lt.s32.totalorder %s35, 1
    %s37 = scalar_select %p36, %s35, 1
    %s38 = smul.addr %s37, 8
    %s39 = scalar_lea.vmem %s1, %s38
    %s40 = sadd.s32 0, 0
    %s41 = smul.u32 2, %s40
    %p42 = scmp.lt.s32.totalorder %s41, 1
    %s43 = scalar_select %p42, %s41, 1
    %s44 = smul.addr %s43, 8
    %s45 = scalar_lea.vmem %s0, %s44
    %s46 = sadd.s32 0, 0
    %s47 = smul.u32 2, %s46
    %s48 = sadd.s32 0, 0
    %s49 = smul.u32 2, %s48
    %p50 = scmp.lt.s32.totalorder %s49, 1
    %s51 = scalar_select %p50, %s49, 1
    %s52 = smul.addr %s51, 8
    %s53 = scalar_lea.vmem %s1, %s52
    %s54 = sadd.s32 0, 0
    %s55 = smul.u32 2, %s54
    %p56 = scmp.eq.s32.totalorder 0, 0
    // Predicated region
    $region10: #{tpu_custom_call.1} parent=1 // pred_check
      %p57 = pneg %p56
    $region11: #{tpu_custom_call.1} parent=1 // pred_check_branch
      %59 = sbr.rel (%p57) target = $region13
    $region12: #{tpu_custom_call.1} parent=1 // pred_region
      %vm60 = vcmask 0
      %61 = vst.msk [vmem:[#allocation2] sm:$0x1] %vm60, 0.0
    $region13: #{tpu_custom_call.1} parent=1 // pred_fallthru
      _
    %v62 = vld [vmem:[%s45] sm:$0xff]
    %v63 = vld [vmem:[%s45 + $0x8] sm:$0xff]
    %v64 = vld [vmem:[%s53] sm:$0xff]
    %v65 = vld [vmem:[%s53 + $0x8] sm:$0xff]
    %vm66 = vcmask 130048
    %v67 = vsel %vm66, %v62, -inf
    %68 = vmax.xlane.f32.xlu0 %v67
    %v69 = vpop.xlane.xlu0 %68
    %v70 = vsel %vm66, %v63, -inf
    %71 = vmax.xlane.f32.xlu0 %v70
    %v72 = vpop.xlane.xlu0 %71
    %v73 = vsub.f32 %v62, %v69
    %v74 = vsub.f32 %v63, %v72
    %v75 = vmul.f32 %v73, 1.442695
    %v76 = vpow.pop %v75
    %v77 = vmul.f32 %v74, 1.442695
    %v78 = vpow.pop %v77
    %v79 = vsel %vm66, %v76, 0.0
    %80 = vadd.xlane.f32.xlu0 %v79
    %v81 = vpop.xlane.xlu0 %80
    %v82 = vsel %vm66, %v78, 0.0
    %83 = vadd.xlane.f32.xlu0 %v82
    %v84 = vpop.xlane.xlu0 %83
    %v85 = vlog2.pop %v81
    %v86 = vmul.f32 %v85, 0.6931472
    %v87 = vlog2.pop %v84
    %v88 = vmul.f32 %v87, 0.6931472
    %v89 = vadd.f32 %v69, %v86
    %v90 = vadd.f32 %v72, %v88
    %v91 = vlaneseq
    %v92 = vand.u32 %v91, 127
    %93 = vset.pattern.permute.xlu0 0
    %94 = vperm.xlu0 %93, %v64
    %v95 = vpop.permute.xlu0 %94
    %96 = vset.pattern.permute.xlu0 0
    %97 = vperm.xlu0 %96, %v65
    %v98 = vpop.permute.xlu0 %97
    %vm99 = vcmp.eq.s32.totalorder %v92, %v95
    %vm100 = vcmp.eq.s32.totalorder %v92, %v98
    %v101 = vsel %vm99, %v62, 0.0
    %v102 = vsel %vm100, %v63, 0.0
    %v103 = vsel %vm66, %v101, 0.0
    %104 = vadd.xlane.f32.xlu0 %v103
    %v105 = vpop.xlane.xlu0 %104
    %v106 = vsel %vm66, %v102, 0.0
    %107 = vadd.xlane.f32.xlu0 %v106
    %v108 = vpop.xlane.xlu0 %107
    %v109 = vsel %vm66, %v62, 0.0
    %110 = vadd.xlane.f32.xlu0 %v109
    %v111 = vpop.xlane.xlu0 %110
    %v112 = vsel %vm66, %v63, 0.0
    %113 = vadd.xlane.f32.xlu0 %v112
    %v114 = vpop.xlane.xlu0 %113
    %v115 = vsub.f32 %v105, %v89
    %v116 = vsub.f32 %v108, %v90
    %v117 = vmul.f32 %v89, 16.0
    %v118 = vmul.f32 %v90, 16.0
    %v119 = vsub.f32 %v111, %v117
    %v120 = vsub.f32 %v114, %v118
    %v121 = vsub.f32 0.0, %v115
    %v122 = vsub.f32 0.0, %v116
    %v123 = vmul.f32 %v121, 0.9
    %v124 = vmul.f32 %v122, 0.9
    %v125 = vmul.f32 %v119, 0.00625
    %v126 = vmul.f32 %v120, 0.00625
    %v127 = vsub.f32 %v123, %v125
    %v128 = vsub.f32 %v124, %v126
    %s129 = sadd.s32 0, 0
    %s130 = smul.u32 %s129, 16
    %v131 = vlaneseq
    %v132 = vshrl.u32 %v131, 7
    %v133 = vadd.s32 %v132, 8
    %v134 = vstv %s130
    %v135 = vadd.s32 %v134, %v132
    %v136 = vadd.s32 %v134, %v133
    %vm137 = vcmp.lt.s32.totalorder %v135, 16
    %vm138 = vcmp.lt.s32.totalorder %v136, 16
    %v139 = vsel %vm137, %v127, 0.0
    %v140 = vsel %vm138, %v128, 0.0
    %v141 = vld [vmem:[#allocation2] sm:$0x1]
    %vm142 = vcmask 7168
    %v143 = vsel %vm142, %v139, 0.0
    %v144 = vsel %vm142, %v140, 0.0
    %v145 = vadd.f32 %v143, %v144
    %146 = vadd.xlane.f32.xlu0 %v145
    %v147 = vpop.xlane.xlu0 %146
    %v148 = vrot.slane %v147, 4
    %v149 = vadd.f32 %v147, %v148
    %v150 = vrot.slane %v149, 2
    %v151 = vadd.f32 %v149, %v150
    %v152 = vrot.slane %v151, 1
    %v153 = vadd.f32 %v151, %v152
    %s154 = vtos %v153
    %v155 = vstv %s154
    %v156 = vadd.f32 %v141, %v155
    %vm157 = vcmask 0
    %158 = vst.msk [vmem:[#allocation2] sm:$0x1] %vm157, %v156
    // Predicated region
    $region14: #{tpu_custom_call.1} parent=1 // pred_check
      _
    $region15: #{tpu_custom_call.1} parent=1 // pred_check_branch
      %160 = sbr.rel (0) target = $region17
    $region16: #{tpu_custom_call.1} parent=1 // pred_region
      %s162 = ssub.s32 16, 16
      %163 = vsyncadd [#allocation3], %s162
      %s165 = sshll.u32 [#allocation2], 4
      %s166 = int_to_ptr.vmem [resolvable:$true] %s165
      %168 = dma.vmem_to_hbm [thread:$0]  %s166, 16, %s2, [#allocation3]
    $region17: #{tpu_custom_call.1} parent=1 // pred_fallthru
      _
    // Predicated region
    $region18: #{tpu_custom_call.1} parent=1 // pred_check
      _
    $region19: #{tpu_custom_call.1} parent=1 // pred_check_branch
      %170 = sbr.rel (0) target = $region21
    $region20: #{tpu_custom_call.1} parent=1 // pred_region
      %171 = dma.done [#allocation3], 16
    $region21: #{tpu_custom_call.1} parent=1 // pred_fallthru
      _
    %172 = vsyncpa [#allocation3], 1

</llo_original>
